<compile_context>
chip_gen: v5e
topology: v5e:2x2
jax: 0.10.0
libtpu: 0.0.40
codegen_flags: <defaults>
</compile_context>

<pallas_src>
import jax
import jax.numpy as jnp
from jax import lax
from jax.experimental import pallas as pl
from jax.experimental.pallas import tpu as pltpu


def _gru_fc_kernel(len_ref, x_ref, wih_ref, bcomb_ref, whh_ref, bhn_ref,
                   wfc_ref, bfc_ref, out_ref, gi_ref):
    """GRU over a padded sequence + final Linear + sigmoid, fully in VMEM.

    len_ref  : (1,) int32 SMEM   true sequence length (<= L_pad)
    x_ref    : (L_pad, 2)        time-major input sequence (zero padded)
    wih_ref  : (2, 3H)           input->hidden weights, packed [r | z | n]
    bcomb_ref: (1, 3H)           [b_ir+b_hr | b_iz+b_hz | b_in]
    whh_ref  : (H, 3H)           hidden->hidden weights, packed [r | z | n]
    bhn_ref  : (1, H)            b_hn (must stay inside the r*(...) term)
    wfc_ref  : (H, 1)            fc weight, transposed
    bfc_ref  : (1, 1)            fc bias
    out_ref  : (1, 1)            sigmoid(fc(h_L))
    gi_ref   : (L_pad, 3H) f32   scratch: precomputed input-side gate preacts
    """
    H = whh_ref.shape[0]
    L_pad = x_ref.shape[0]
    length = len_ref[0]

    # One parallel MXU call for the whole sequence's input projection
    # (b_hr / b_hz already folded into bcomb on the host).
    gi_ref[...] = (
        jnp.dot(x_ref[...], wih_ref[...], preferred_element_type=jnp.float32)
        + bcomb_ref[...])

    # Hoist loop-invariant weight/bias loads out of the recurrence.
    whh = whh_ref[...]            # (H, 3H)
    b_hn = bhn_ref[...]           # (1, H)

    def step(t, h):
        gi = gi_ref[pl.ds(t, 1), :]                                   # (1, 3H)
        gh = jnp.dot(h, whh, preferred_element_type=jnp.float32)      # (1, 3H)
        rz = jax.nn.sigmoid(gi[:, :2 * H] + gh[:, :2 * H])            # (1, 2H)
        r = rz[:, :H]
        z = rz[:, H:]
        n = jnp.tanh(gi[:, 2 * H:] + r * (gh[:, 2 * H:] + b_hn))
        h_new = (1.0 - z) * n + z * h
        # Mask out padded timesteps so padding never perturbs the state.
        return jnp.where(t < length, h_new, h)

    h0 = jnp.zeros((1, H), jnp.float32)
    unroll = 8 if L_pad % 8 == 0 else 1
    h = lax.fori_loop(0, L_pad, step, h0, unroll=unroll)

    logits = (jnp.dot(h, wfc_ref[...], preferred_element_type=jnp.float32)
              + bfc_ref[...])
    out_ref[...] = jax.nn.sigmoid(logits)


class ChanceCalculatorPallas:
    """JAX/Pallas re-implementation of ChanceCalculator.forward."""

    def __init__(self, hidden_size: int = 32, key=None):
        self.hidden_size = hidden_size
        if key is None:
            key = jax.random.PRNGKey(0)
        k = jax.random.split(key, 6)
        H = hidden_size
        bound = 1.0 / jnp.sqrt(jnp.float32(H))  # PyTorch-style uniform init

        # nn.GRU(2, H): weight_ih_l0 (3H, 2), weight_hh_l0 (3H, H), biases (3H,)
        w_ih = jax.random.uniform(k[0], (3 * H, 2), jnp.float32, -bound, bound)
        w_hh = jax.random.uniform(k[1], (3 * H, H), jnp.float32, -bound, bound)
        b_ih = jax.random.uniform(k[2], (3 * H,), jnp.float32, -bound, bound)
        b_hh = jax.random.uniform(k[3], (3 * H,), jnp.float32, -bound, bound)
        # nn.Linear(H, 1): weight (1, H), bias (1,)
        w_fc = jax.random.uniform(k[4], (1, H), jnp.float32, -bound, bound)
        b_fc = jax.random.uniform(k[5], (1,), jnp.float32, -bound, bound)

        # Kernel packing (gate blocks [r | z | n] along the lane dimension):
        #   wih (2, 3H), whh (H, 3H),
        #   b_comb = [b_ir+b_hr | b_iz+b_hz | b_in]   (b_hr/b_hz folded here),
        #   b_hn kept separate (stays inside the r*(...) term).
        self.wih = w_ih.T                                            # (2, 3H)
        self.whh = w_hh.T                                            # (H, 3H)
        b_comb = jnp.concatenate([b_ih[:2 * H] + b_hh[:2 * H], b_ih[2 * H:]])
        self.b_comb = b_comb.reshape(1, 3 * H)                       # (1, 3H)
        self.b_hn = b_hh[2 * H:].reshape(1, H)                       # (1, H)
        self.wfc = w_fc.T                                            # (H, 1)
        self.bfc = b_fc.reshape(1, 1)                                # (1, 1)

        self._calls = {}  # L_pad -> jitted pallas_call (no per-length recompile)

    def _get_call(self, L_pad: int):
        fn = self._calls.get(L_pad)
        if fn is None:
            H = self.hidden_size
            fn = jax.jit(pl.pallas_call(
                _gru_fc_kernel,
                out_shape=jax.ShapeDtypeStruct((1, 1), jnp.float32),
                in_specs=(
                    [pl.BlockSpec(memory_space=pltpu.MemorySpace.SMEM)]
                    + [pl.BlockSpec(memory_space=pltpu.MemorySpace.VMEM)] * 7),
                out_specs=pl.BlockSpec(memory_space=pltpu.MemorySpace.VMEM),
                scratch_shapes=[pltpu.VMEM((L_pad, 3 * H), jnp.float32)],
            ))
            self._calls[L_pad] = fn
        return fn

    def __call__(self, samples):
        H = self.hidden_size
        if len(samples) == 0:
            # Empty-sequence branch of the reference: sigmoid(fc(zeros)).
            return jax.nn.sigmoid(
                jnp.zeros((1, H), jnp.float32) @ self.wfc + self.bfc)

        # torch.Tensor(samples): (L, 2) float32 (bool -> 0.0/1.0)
        x = jnp.asarray(samples, dtype=jnp.float32)
        L = x.shape[0]
        # Bucket to a power of two (>= 8) so the kernel is shape-stable.
        L_pad = max(8, pl.next_power_of_2(L))
        if L_pad > L:
            x = jnp.pad(x, ((0, L_pad - L), (0, 0)))
        length = jnp.asarray([L], dtype=jnp.int32)

        return self._get_call(L_pad)(
            length, x, self.wih, self.b_comb, self.whh, self.b_hn,
            self.wfc, self.bfc)


def _reference_forward(model, samples):
    """Plain-JAX reference (same packed weights) for the self-check."""
    H = model.hidden_size
    if len(samples) == 0:
        return jax.nn.sigmoid(
            jnp.zeros((1, H), jnp.float32) @ model.wfc + model.bfc)
    x = jnp.asarray(samples, dtype=jnp.float32)
    h = jnp.zeros((1, H), jnp.float32)
    for t in range(x.shape[0]):
        gi = x[t:t + 1] @ model.wih + model.b_comb
        gh = h @ model.whh
        r = jax.nn.sigmoid(gi[:, :H] + gh[:, :H])
        z = jax.nn.sigmoid(gi[:, H:2 * H] + gh[:, H:2 * H])
        n = jnp.tanh(gi[:, 2 * H:] + r * (gh[:, 2 * H:] + model.b_hn))
        h = (1.0 - z) * n + z * h
    return jax.nn.sigmoid(h @ model.wfc + model.bfc)


if __name__ == "__main__":
    key = jax.random.PRNGKey(0)
    model = ChanceCalculatorPallas(hidden_size=32, key=key)

    # Deterministic small example: seq of 8 (int, bool) samples.
    k_int, k_bool = jax.random.split(jax.random.PRNGKey(0))
    ints = jax.random.randint(k_int, (8,), 0, 10)
    bools = jax.random.bernoulli(k_bool, 0.5, (8,))
    samples = [(int(i), bool(b)) for i, b in zip(ints, bools)]

    out = jax.block_until_ready(model(samples))
    ref = jax.block_until_ready(_reference_forward(model, samples))

    assert out.shape == (1, 1)
    assert bool(jnp.all((out >= 0.0) & (out <= 1.0)))
    assert float(jnp.max(jnp.abs(out - ref))) < 1e-4, (out, ref)

    # Also exercise a non-power-of-two length (padding + masking path) and
    # the empty-sequence branch.
    samples2 = samples[:5]
    out2 = jax.block_until_ready(model(samples2))
    ref2 = jax.block_until_ready(_reference_forward(model, samples2))
    assert float(jnp.max(jnp.abs(out2 - ref2))) < 1e-4, (out2, ref2)
    out0 = jax.block_until_ready(model([]))
    assert out0.shape == (1, 1)

    print("KERNEL_OK")
</pallas_src>

<mosaic_0001>
module attributes {stable_mosaic.version = 11 : i64} {
  func.func @_gru_fc_kernel(%arg0: memref<1xi32, #tpu.memory_space<smem>>, %arg1: memref<8x2xf32, #tpu.memory_space<vmem>>, %arg2: memref<2x96xf32, #tpu.memory_space<vmem>>, %arg3: memref<1x96xf32, #tpu.memory_space<vmem>>, %arg4: memref<32x96xf32, #tpu.memory_space<vmem>>, %arg5: memref<1x32xf32, #tpu.memory_space<vmem>>, %arg6: memref<32x1xf32, #tpu.memory_space<vmem>>, %arg7: memref<1x1xf32, #tpu.memory_space<vmem>>, %arg8: memref<1x1xf32, #tpu.memory_space<vmem>>, %arg9: memref<8x96xf32, #tpu.memory_space<vmem>>) attributes {dimension_semantics = [], scalar_prefetch = 0 : i64, scratch_operands = 1 : i64, tpu.core_type = #tpu.core_type<tc>} {
    %c0 = arith.constant 0 : index
    %0 = memref.load %arg0[%c0] : memref<1xi32, #tpu.memory_space<smem>>
    %c0_0 = arith.constant 0 : index
    %c0_1 = arith.constant 0 : index
    %1 = vector.load %arg1[%c0_0, %c0_1] : memref<8x2xf32, #tpu.memory_space<vmem>>, vector<8x2xf32>
    %c0_2 = arith.constant 0 : index
    %c0_3 = arith.constant 0 : index
    %2 = vector.load %arg2[%c0_2, %c0_3] : memref<2x96xf32, #tpu.memory_space<vmem>>, vector<2x96xf32>
    %cst = arith.constant dense<0.000000e+00> : vector<8x96xf32>
    %3 = tpu.matmul %1, %2, %cst {dimension_numbers = #tpu.dot_dimension_numbers<[1], [0], [0], [1], [0, 0, 1, 1], [], []>} : vector<8x2xf32>, vector<2x96xf32>, vector<8x96xf32> -> vector<8x96xf32>
    %c0_4 = arith.constant 0 : index
    %c0_5 = arith.constant 0 : index
    %4 = vector.load %arg3[%c0_4, %c0_5] : memref<1x96xf32, #tpu.memory_space<vmem>>, vector<1x96xf32>
    %5 = vector.broadcast %4 : vector<1x96xf32> to vector<8x96xf32>
    %6 = arith.addf %3, %5 : vector<8x96xf32>
    %c0_6 = arith.constant 0 : index
    %c0_7 = arith.constant 0 : index
    %7 = vector.load %arg9[%c0_6, %c0_7] : memref<8x96xf32, #tpu.memory_space<vmem>>, vector<8x96xf32>
    tpu.vector_store %arg9[%c0_6, %c0_7], %6 {strides = array<i32>} : memref<8x96xf32, #tpu.memory_space<vmem>>, vector<8x96xf32>,
    %c0_8 = arith.constant 0 : index
    %c0_9 = arith.constant 0 : index
    %8 = vector.load %arg4[%c0_8, %c0_9] : memref<32x96xf32, #tpu.memory_space<vmem>>, vector<32x96xf32>
    %c0_10 = arith.constant 0 : index
    %c0_11 = arith.constant 0 : index
    %9 = vector.load %arg5[%c0_10, %c0_11] : memref<1x32xf32, #tpu.memory_space<vmem>>, vector<1x32xf32>
    %cst_12 = arith.constant 0.000000e+00 : f32
    %10 = vector.broadcast %cst_12 : f32 to vector<1x32xf32>
    %c0_i32 = arith.constant 0 : i32
    %11 = arith.index_cast %c0_i32 : i32 to index
    %c0_13 = arith.constant 0 : index
    %12 = vector.load %arg9[%11, %c0_13] : memref<8x96xf32, #tpu.memory_space<vmem>>, vector<1x96xf32>
    %cst_14 = arith.constant dense<0.000000e+00> : vector<1x96xf32>
    %13 = tpu.matmul %10, %8, %cst_14 {dimension_numbers = #tpu.dot_dimension_numbers<[1], [0], [0], [1], [0, 0, 1, 1], [], []>} : vector<1x32xf32>, vector<32x96xf32>, vector<1x96xf32> -> vector<1x96xf32>
    %14 = vector.extract_strided_slice %12 {offsets = [0, 0], sizes = [1, 64], strides = [1, 1]} : vector<1x96xf32> to vector<1x64xf32>
    %15 = vector.extract_strided_slice %13 {offsets = [0, 0], sizes = [1, 64], strides = [1, 1]} : vector<1x96xf32> to vector<1x64xf32>
    %16 = arith.addf %14, %15 : vector<1x64xf32>
    %17 = arith.negf %16 : vector<1x64xf32>
    %18 = math.exp %17 : vector<1x64xf32>
    %cst_15 = arith.constant 1.000000e+00 : f32
    %19 = vector.broadcast %cst_15 : f32 to vector<1x64xf32>
    %20 = arith.addf %19, %18 : vector<1x64xf32>
    %21 = arith.divf %19, %20 : vector<1x64xf32>
    %22 = vector.extract_strided_slice %21 {offsets = [0, 0], sizes = [1, 32], strides = [1, 1]} : vector<1x64xf32> to vector<1x32xf32>
    %23 = vector.extract_strided_slice %21 {offsets = [0, 32], sizes = [1, 32], strides = [1, 1]} : vector<1x64xf32> to vector<1x32xf32>
    %24 = vector.extract_strided_slice %12 {offsets = [0, 64], sizes = [1, 32], strides = [1, 1]} : vector<1x96xf32> to vector<1x32xf32>
    %25 = vector.extract_strided_slice %13 {offsets = [0, 64], sizes = [1, 32], strides = [1, 1]} : vector<1x96xf32> to vector<1x32xf32>
    %26 = arith.addf %25, %9 : vector<1x32xf32>
    %27 = arith.mulf %22, %26 : vector<1x32xf32>
    %28 = arith.addf %24, %27 : vector<1x32xf32>
    %29 = math.tanh %28 : vector<1x32xf32>
    %cst_16 = arith.constant 1.000000e+00 : f32
    %30 = vector.broadcast %cst_16 : f32 to vector<1x32xf32>
    %31 = arith.subf %30, %23 : vector<1x32xf32>
    %32 = arith.mulf %31, %29 : vector<1x32xf32>
    %33 = arith.mulf %23, %10 : vector<1x32xf32>
    %34 = arith.addf %32, %33 : vector<1x32xf32>
    %35 = arith.cmpi slt, %c0_i32, %0 : i32
    %36 = arith.select %35, %34, %10 : vector<1x32xf32>
    %c1_i32 = arith.constant 1 : i32
    %37 = arith.index_cast %c1_i32 : i32 to index
    %c0_17 = arith.constant 0 : index
    %38 = vector.load %arg9[%37, %c0_17] : memref<8x96xf32, #tpu.memory_space<vmem>>, vector<1x96xf32>
    %cst_18 = arith.constant dense<0.000000e+00> : vector<1x96xf32>
    %39 = tpu.matmul %36, %8, %cst_18 {dimension_numbers = #tpu.dot_dimension_numbers<[1], [0], [0], [1], [0, 0, 1, 1], [], []>} : vector<1x32xf32>, vector<32x96xf32>, vector<1x96xf32> -> vector<1x96xf32>
    %40 = vector.extract_strided_slice %38 {offsets = [0, 0], sizes = [1, 64], strides = [1, 1]} : vector<1x96xf32> to vector<1x64xf32>
    %41 = vector.extract_strided_slice %39 {offsets = [0, 0], sizes = [1, 64], strides = [1, 1]} : vector<1x96xf32> to vector<1x64xf32>
    %42 = arith.addf %40, %41 : vector<1x64xf32>
    %43 = arith.negf %42 : vector<1x64xf32>
    %44 = math.exp %43 : vector<1x64xf32>
    %cst_19 = arith.constant 1.000000e+00 : f32
    %45 = vector.broadcast %cst_19 : f32 to vector<1x64xf32>
    %46 = arith.addf %45, %44 : vector<1x64xf32>
    %47 = arith.divf %45, %46 : vector<1x64xf32>
    %48 = vector.extract_strided_slice %47 {offsets = [0, 0], sizes = [1, 32], strides = [1, 1]} : vector<1x64xf32> to vector<1x32xf32>
    %49 = vector.extract_strided_slice %47 {offsets = [0, 32], sizes = [1, 32], strides = [1, 1]} : vector<1x64xf32> to vector<1x32xf32>
    %50 = vector.extract_strided_slice %38 {offsets = [0, 64], sizes = [1, 32], strides = [1, 1]} : vector<1x96xf32> to vector<1x32xf32>
    %51 = vector.extract_strided_slice %39 {offsets = [0, 64], sizes = [1, 32], strides = [1, 1]} : vector<1x96xf32> to vector<1x32xf32>
    %52 = arith.addf %51, %9 : vector<1x32xf32>
    %53 = arith.mulf %48, %52 : vector<1x32xf32>
    %54 = arith.addf %50, %53 : vector<1x32xf32>
    %55 = math.tanh %54 : vector<1x32xf32>
    %cst_20 = arith.constant 1.000000e+00 : f32
    %56 = vector.broadcast %cst_20 : f32 to vector<1x32xf32>
    %57 = arith.subf %56, %49 : vector<1x32xf32>
    %58 = arith.mulf %57, %55 : vector<1x32xf32>
    %59 = arith.mulf %49, %36 : vector<1x32xf32>
    %60 = arith.addf %58, %59 : vector<1x32xf32>
    %61 = arith.cmpi slt, %c1_i32, %0 : i32
    %62 = arith.select %61, %60, %36 : vector<1x32xf32>
    %c2_i32 = arith.constant 2 : i32
    %63 = arith.index_cast %c2_i32 : i32 to index
    %c0_21 = arith.constant 0 : index
    %64 = vector.load %arg9[%63, %c0_21] : memref<8x96xf32, #tpu.memory_space<vmem>>, vector<1x96xf32>
    %cst_22 = arith.constant dense<0.000000e+00> : vector<1x96xf32>
    %65 = tpu.matmul %62, %8, %cst_22 {dimension_numbers = #tpu.dot_dimension_numbers<[1], [0], [0], [1], [0, 0, 1, 1], [], []>} : vector<1x32xf32>, vector<32x96xf32>, vector<1x96xf32> -> vector<1x96xf32>
    %66 = vector.extract_strided_slice %64 {offsets = [0, 0], sizes = [1, 64], strides = [1, 1]} : vector<1x96xf32> to vector<1x64xf32>
    %67 = vector.extract_strided_slice %65 {offsets = [0, 0], sizes = [1, 64], strides = [1, 1]} : vector<1x96xf32> to vector<1x64xf32>
    %68 = arith.addf %66, %67 : vector<1x64xf32>
    %69 = arith.negf %68 : vector<1x64xf32>
    %70 = math.exp %69 : vector<1x64xf32>
    %cst_23 = arith.constant 1.000000e+00 : f32
    %71 = vector.broadcast %cst_23 : f32 to vector<1x64xf32>
    %72 = arith.addf %71, %70 : vector<1x64xf32>
    %73 = arith.divf %71, %72 : vector<1x64xf32>
    %74 = vector.extract_strided_slice %73 {offsets = [0, 0], sizes = [1, 32], strides = [1, 1]} : vector<1x64xf32> to vector<1x32xf32>
    %75 = vector.extract_strided_slice %73 {offsets = [0, 32], sizes = [1, 32], strides = [1, 1]} : vector<1x64xf32> to vector<1x32xf32>
    %76 = vector.extract_strided_slice %64 {offsets = [0, 64], sizes = [1, 32], strides = [1, 1]} : vector<1x96xf32> to vector<1x32xf32>
    %77 = vector.extract_strided_slice %65 {offsets = [0, 64], sizes = [1, 32], strides = [1, 1]} : vector<1x96xf32> to vector<1x32xf32>
    %78 = arith.addf %77, %9 : vector<1x32xf32>
    %79 = arith.mulf %74, %78 : vector<1x32xf32>
    %80 = arith.addf %76, %79 : vector<1x32xf32>
    %81 = math.tanh %80 : vector<1x32xf32>
    %cst_24 = arith.constant 1.000000e+00 : f32
    %82 = vector.broadcast %cst_24 : f32 to vector<1x32xf32>
    %83 = arith.subf %82, %75 : vector<1x32xf32>
    %84 = arith.mulf %83, %81 : vector<1x32xf32>
    %85 = arith.mulf %75, %62 : vector<1x32xf32>
    %86 = arith.addf %84, %85 : vector<1x32xf32>
    %87 = arith.cmpi slt, %c2_i32, %0 : i32
    %88 = arith.select %87, %86, %62 : vector<1x32xf32>
    %c3_i32 = arith.constant 3 : i32
    %89 = arith.index_cast %c3_i32 : i32 to index
    %c0_25 = arith.constant 0 : index
    %90 = vector.load %arg9[%89, %c0_25] : memref<8x96xf32, #tpu.memory_space<vmem>>, vector<1x96xf32>
    %cst_26 = arith.constant dense<0.000000e+00> : vector<1x96xf32>
    %91 = tpu.matmul %88, %8, %cst_26 {dimension_numbers = #tpu.dot_dimension_numbers<[1], [0], [0], [1], [0, 0, 1, 1], [], []>} : vector<1x32xf32>, vector<32x96xf32>, vector<1x96xf32> -> vector<1x96xf32>
    %92 = vector.extract_strided_slice %90 {offsets = [0, 0], sizes = [1, 64], strides = [1, 1]} : vector<1x96xf32> to vector<1x64xf32>
    %93 = vector.extract_strided_slice %91 {offsets = [0, 0], sizes = [1, 64], strides = [1, 1]} : vector<1x96xf32> to vector<1x64xf32>
    %94 = arith.addf %92, %93 : vector<1x64xf32>
    %95 = arith.negf %94 : vector<1x64xf32>
    %96 = math.exp %95 : vector<1x64xf32>
    %cst_27 = arith.constant 1.000000e+00 : f32
    %97 = vector.broadcast %cst_27 : f32 to vector<1x64xf32>
    %98 = arith.addf %97, %96 : vector<1x64xf32>
    %99 = arith.divf %97, %98 : vector<1x64xf32>
    %100 = vector.extract_strided_slice %99 {offsets = [0, 0], sizes = [1, 32], strides = [1, 1]} : vector<1x64xf32> to vector<1x32xf32>
    %101 = vector.extract_strided_slice %99 {offsets = [0, 32], sizes = [1, 32], strides = [1, 1]} : vector<1x64xf32> to vector<1x32xf32>
    %102 = vector.extract_strided_slice %90 {offsets = [0, 64], sizes = [1, 32], strides = [1, 1]} : vector<1x96xf32> to vector<1x32xf32>
    %103 = vector.extract_strided_slice %91 {offsets = [0, 64], sizes = [1, 32], strides = [1, 1]} : vector<1x96xf32> to vector<1x32xf32>
    %104 = arith.addf %103, %9 : vector<1x32xf32>
    %105 = arith.mulf %100, %104 : vector<1x32xf32>
    %106 = arith.addf %102, %105 : vector<1x32xf32>
    %107 = math.tanh %106 : vector<1x32xf32>
    %cst_28 = arith.constant 1.000000e+00 : f32
    %108 = vector.broadcast %cst_28 : f32 to vector<1x32xf32>
    %109 = arith.subf %108, %101 : vector<1x32xf32>
    %110 = arith.mulf %109, %107 : vector<1x32xf32>
    %111 = arith.mulf %101, %88 : vector<1x32xf32>
    %112 = arith.addf %110, %111 : vector<1x32xf32>
    %113 = arith.cmpi slt, %c3_i32, %0 : i32
    %114 = arith.select %113, %112, %88 : vector<1x32xf32>
    %c4_i32 = arith.constant 4 : i32
    %115 = arith.index_cast %c4_i32 : i32 to index
    %c0_29 = arith.constant 0 : index
    %116 = vector.load %arg9[%115, %c0_29] : memref<8x96xf32, #tpu.memory_space<vmem>>, vector<1x96xf32>
    %cst_30 = arith.constant dense<0.000000e+00> : vector<1x96xf32>
    %117 = tpu.matmul %114, %8, %cst_30 {dimension_numbers = #tpu.dot_dimension_numbers<[1], [0], [0], [1], [0, 0, 1, 1], [], []>} : vector<1x32xf32>, vector<32x96xf32>, vector<1x96xf32> -> vector<1x96xf32>
    %118 = vector.extract_strided_slice %116 {offsets = [0, 0], sizes = [1, 64], strides = [1, 1]} : vector<1x96xf32> to vector<1x64xf32>
    %119 = vector.extract_strided_slice %117 {offsets = [0, 0], sizes = [1, 64], strides = [1, 1]} : vector<1x96xf32> to vector<1x64xf32>
    %120 = arith.addf %118, %119 : vector<1x64xf32>
    %121 = arith.negf %120 : vector<1x64xf32>
    %122 = math.exp %121 : vector<1x64xf32>
    %cst_31 = arith.constant 1.000000e+00 : f32
    %123 = vector.broadcast %cst_31 : f32 to vector<1x64xf32>
    %124 = arith.addf %123, %122 : vector<1x64xf32>
    %125 = arith.divf %123, %124 : vector<1x64xf32>
    %126 = vector.extract_strided_slice %125 {offsets = [0, 0], sizes = [1, 32], strides = [1, 1]} : vector<1x64xf32> to vector<1x32xf32>
    %127 = vector.extract_strided_slice %125 {offsets = [0, 32], sizes = [1, 32], strides = [1, 1]} : vector<1x64xf32> to vector<1x32xf32>
    %128 = vector.extract_strided_slice %116 {offsets = [0, 64], sizes = [1, 32], strides = [1, 1]} : vector<1x96xf32> to vector<1x32xf32>
    %129 = vector.extract_strided_slice %117 {offsets = [0, 64], sizes = [1, 32], strides = [1, 1]} : vector<1x96xf32> to vector<1x32xf32>
    %130 = arith.addf %129, %9 : vector<1x32xf32>
    %131 = arith.mulf %126, %130 : vector<1x32xf32>
    %132 = arith.addf %128, %131 : vector<1x32xf32>
    %133 = math.tanh %132 : vector<1x32xf32>
    %cst_32 = arith.constant 1.000000e+00 : f32
    %134 = vector.broadcast %cst_32 : f32 to vector<1x32xf32>
    %135 = arith.subf %134, %127 : vector<1x32xf32>
    %136 = arith.mulf %135, %133 : vector<1x32xf32>
    %137 = arith.mulf %127, %114 : vector<1x32xf32>
    %138 = arith.addf %136, %137 : vector<1x32xf32>
    %139 = arith.cmpi slt, %c4_i32, %0 : i32
    %140 = arith.select %139, %138, %114 : vector<1x32xf32>
    %c5_i32 = arith.constant 5 : i32
    %141 = arith.index_cast %c5_i32 : i32 to index
    %c0_33 = arith.constant 0 : index
    %142 = vector.load %arg9[%141, %c0_33] : memref<8x96xf32, #tpu.memory_space<vmem>>, vector<1x96xf32>
    %cst_34 = arith.constant dense<0.000000e+00> : vector<1x96xf32>
    %143 = tpu.matmul %140, %8, %cst_34 {dimension_numbers = #tpu.dot_dimension_numbers<[1], [0], [0], [1], [0, 0, 1, 1], [], []>} : vector<1x32xf32>, vector<32x96xf32>, vector<1x96xf32> -> vector<1x96xf32>
    %144 = vector.extract_strided_slice %142 {offsets = [0, 0], sizes = [1, 64], strides = [1, 1]} : vector<1x96xf32> to vector<1x64xf32>
    %145 = vector.extract_strided_slice %143 {offsets = [0, 0], sizes = [1, 64], strides = [1, 1]} : vector<1x96xf32> to vector<1x64xf32>
    %146 = arith.addf %144, %145 : vector<1x64xf32>
    %147 = arith.negf %146 : vector<1x64xf32>
    %148 = math.exp %147 : vector<1x64xf32>
    %cst_35 = arith.constant 1.000000e+00 : f32
    %149 = vector.broadcast %cst_35 : f32 to vector<1x64xf32>
    %150 = arith.addf %149, %148 : vector<1x64xf32>
    %151 = arith.divf %149, %150 : vector<1x64xf32>
    %152 = vector.extract_strided_slice %151 {offsets = [0, 0], sizes = [1, 32], strides = [1, 1]} : vector<1x64xf32> to vector<1x32xf32>
    %153 = vector.extract_strided_slice %151 {offsets = [0, 32], sizes = [1, 32], strides = [1, 1]} : vector<1x64xf32> to vector<1x32xf32>
    %154 = vector.extract_strided_slice %142 {offsets = [0, 64], sizes = [1, 32], strides = [1, 1]} : vector<1x96xf32> to vector<1x32xf32>
    %155 = vector.extract_strided_slice %143 {offsets = [0, 64], sizes = [1, 32], strides = [1, 1]} : vector<1x96xf32> to vector<1x32xf32>
    %156 = arith.addf %155, %9 : vector<1x32xf32>
    %157 = arith.mulf %152, %156 : vector<1x32xf32>
    %158 = arith.addf %154, %157 : vector<1x32xf32>
    %159 = math.tanh %158 : vector<1x32xf32>
    %cst_36 = arith.constant 1.000000e+00 : f32
    %160 = vector.broadcast %cst_36 : f32 to vector<1x32xf32>
    %161 = arith.subf %160, %153 : vector<1x32xf32>
    %162 = arith.mulf %161, %159 : vector<1x32xf32>
    %163 = arith.mulf %153, %140 : vector<1x32xf32>
    %164 = arith.addf %162, %163 : vector<1x32xf32>
    %165 = arith.cmpi slt, %c5_i32, %0 : i32
    %166 = arith.select %165, %164, %140 : vector<1x32xf32>
    %c6_i32 = arith.constant 6 : i32
    %167 = arith.index_cast %c6_i32 : i32 to index
    %c0_37 = arith.constant 0 : index
    %168 = vector.load %arg9[%167, %c0_37] : memref<8x96xf32, #tpu.memory_space<vmem>>, vector<1x96xf32>
    %cst_38 = arith.constant dense<0.000000e+00> : vector<1x96xf32>
    %169 = tpu.matmul %166, %8, %cst_38 {dimension_numbers = #tpu.dot_dimension_numbers<[1], [0], [0], [1], [0, 0, 1, 1], [], []>} : vector<1x32xf32>, vector<32x96xf32>, vector<1x96xf32> -> vector<1x96xf32>
    %170 = vector.extract_strided_slice %168 {offsets = [0, 0], sizes = [1, 64], strides = [1, 1]} : vector<1x96xf32> to vector<1x64xf32>
    %171 = vector.extract_strided_slice %169 {offsets = [0, 0], sizes = [1, 64], strides = [1, 1]} : vector<1x96xf32> to vector<1x64xf32>
    %172 = arith.addf %170, %171 : vector<1x64xf32>
    %173 = arith.negf %172 : vector<1x64xf32>
    %174 = math.exp %173 : vector<1x64xf32>
    %cst_39 = arith.constant 1.000000e+00 : f32
    %175 = vector.broadcast %cst_39 : f32 to vector<1x64xf32>
    %176 = arith.addf %175, %174 : vector<1x64xf32>
    %177 = arith.divf %175, %176 : vector<1x64xf32>
    %178 = vector.extract_strided_slice %177 {offsets = [0, 0], sizes = [1, 32], strides = [1, 1]} : vector<1x64xf32> to vector<1x32xf32>
    %179 = vector.extract_strided_slice %177 {offsets = [0, 32], sizes = [1, 32], strides = [1, 1]} : vector<1x64xf32> to vector<1x32xf32>
    %180 = vector.extract_strided_slice %168 {offsets = [0, 64], sizes = [1, 32], strides = [1, 1]} : vector<1x96xf32> to vector<1x32xf32>
    %181 = vector.extract_strided_slice %169 {offsets = [0, 64], sizes = [1, 32], strides = [1, 1]} : vector<1x96xf32> to vector<1x32xf32>
    %182 = arith.addf %181, %9 : vector<1x32xf32>
    %183 = arith.mulf %178, %182 : vector<1x32xf32>
    %184 = arith.addf %180, %183 : vector<1x32xf32>
    %185 = math.tanh %184 : vector<1x32xf32>
    %cst_40 = arith.constant 1.000000e+00 : f32
    %186 = vector.broadcast %cst_40 : f32 to vector<1x32xf32>
    %187 = arith.subf %186, %179 : vector<1x32xf32>
    %188 = arith.mulf %187, %185 : vector<1x32xf32>
    %189 = arith.mulf %179, %166 : vector<1x32xf32>
    %190 = arith.addf %188, %189 : vector<1x32xf32>
    %191 = arith.cmpi slt, %c6_i32, %0 : i32
    %192 = arith.select %191, %190, %166 : vector<1x32xf32>
    %c7_i32 = arith.constant 7 : i32
    %193 = arith.index_cast %c7_i32 : i32 to index
    %c0_41 = arith.constant 0 : index
    %194 = vector.load %arg9[%193, %c0_41] : memref<8x96xf32, #tpu.memory_space<vmem>>, vector<1x96xf32>
    %cst_42 = arith.constant dense<0.000000e+00> : vector<1x96xf32>
    %195 = tpu.matmul %192, %8, %cst_42 {dimension_numbers = #tpu.dot_dimension_numbers<[1], [0], [0], [1], [0, 0, 1, 1], [], []>} : vector<1x32xf32>, vector<32x96xf32>, vector<1x96xf32> -> vector<1x96xf32>
    %196 = vector.extract_strided_slice %194 {offsets = [0, 0], sizes = [1, 64], strides = [1, 1]} : vector<1x96xf32> to vector<1x64xf32>
    %197 = vector.extract_strided_slice %195 {offsets = [0, 0], sizes = [1, 64], strides = [1, 1]} : vector<1x96xf32> to vector<1x64xf32>
    %198 = arith.addf %196, %197 : vector<1x64xf32>
    %199 = arith.negf %198 : vector<1x64xf32>
    %200 = math.exp %199 : vector<1x64xf32>
    %cst_43 = arith.constant 1.000000e+00 : f32
    %201 = vector.broadcast %cst_43 : f32 to vector<1x64xf32>
    %202 = arith.addf %201, %200 : vector<1x64xf32>
    %203 = arith.divf %201, %202 : vector<1x64xf32>
    %204 = vector.extract_strided_slice %203 {offsets = [0, 0], sizes = [1, 32], strides = [1, 1]} : vector<1x64xf32> to vector<1x32xf32>
    %205 = vector.extract_strided_slice %203 {offsets = [0, 32], sizes = [1, 32], strides = [1, 1]} : vector<1x64xf32> to vector<1x32xf32>
    %206 = vector.extract_strided_slice %194 {offsets = [0, 64], sizes = [1, 32], strides = [1, 1]} : vector<1x96xf32> to vector<1x32xf32>
    %207 = vector.extract_strided_slice %195 {offsets = [0, 64], sizes = [1, 32], strides = [1, 1]} : vector<1x96xf32> to vector<1x32xf32>
    %208 = arith.addf %207, %9 : vector<1x32xf32>
    %209 = arith.mulf %204, %208 : vector<1x32xf32>
    %210 = arith.addf %206, %209 : vector<1x32xf32>
    %211 = math.tanh %210 : vector<1x32xf32>
    %cst_44 = arith.constant 1.000000e+00 : f32
    %212 = vector.broadcast %cst_44 : f32 to vector<1x32xf32>
    %213 = arith.subf %212, %205 : vector<1x32xf32>
    %214 = arith.mulf %213, %211 : vector<1x32xf32>
    %215 = arith.mulf %205, %192 : vector<1x32xf32>
    %216 = arith.addf %214, %215 : vector<1x32xf32>
    %217 = arith.cmpi slt, %c7_i32, %0 : i32
    %218 = arith.select %217, %216, %192 : vector<1x32xf32>
    %c8_i32 = arith.constant 8 : i32
    %c0_45 = arith.constant 0 : index
    %c0_46 = arith.constant 0 : index
    %219 = vector.load %arg6[%c0_45, %c0_46] : memref<32x1xf32, #tpu.memory_space<vmem>>, vector<32x1xf32>
    %cst_47 = arith.constant dense<0.000000e+00> : vector<1x1xf32>
    %220 = tpu.matmul %218, %219, %cst_47 {dimension_numbers = #tpu.dot_dimension_numbers<[1], [0], [0], [1], [0, 0, 1, 1], [], []>} : vector<1x32xf32>, vector<32x1xf32>, vector<1x1xf32> -> vector<1x1xf32>
    %c0_48 = arith.constant 0 : index
    %c0_49 = arith.constant 0 : index
    %221 = vector.load %arg7[%c0_48, %c0_49] : memref<1x1xf32, #tpu.memory_space<vmem>>, vector<1x1xf32>
    %222 = arith.addf %220, %221 : vector<1x1xf32>
    %223 = arith.negf %222 : vector<1x1xf32>
    %224 = math.exp %223 : vector<1x1xf32>
    %cst_50 = arith.constant 1.000000e+00 : f32
    %225 = vector.broadcast %cst_50 : f32 to vector<1x1xf32>
    %226 = arith.addf %225, %224 : vector<1x1xf32>
    %227 = arith.divf %225, %226 : vector<1x1xf32>
    %c0_51 = arith.constant 0 : index
    %c0_52 = arith.constant 0 : index
    %228 = vector.load %arg8[%c0_51, %c0_52] : memref<1x1xf32, #tpu.memory_space<vmem>>, vector<1x1xf32>
    tpu.vector_store %arg8[%c0_51, %c0_52], %227 {strides = array<i32>} : memref<1x1xf32, #tpu.memory_space<vmem>>, vector<1x1xf32>,
    return
  }
}

</mosaic_0001>

<llo_original>
// kernel: tpu_custom_call.1
$region0: #{tpu_custom_call.1}
  #allocation0 [shape = 'u32[]', space=smem, size = 0x4, offset = 0x4, fixed_abs, tag = 'smem constant byte address 0x4 - core index']
  #allocation1 [shape = 'u32[72,128]{1,0:T(1,128)}', space=vmem, size = 0x9000, scoped, tag = 'internal scratch']
  #allocation2 [shape = 'f32[8,96]{1,0:T(8,128)}', space=vmem, size = 0x1000, scoped, tag = 'scratch operand']
  #allocation3 [shape = 's32[1]{0:T(128)S(6)}', space=smem, size = 0x200, scoped, tag = 'scoped memory for tpu_custom_call.1']
  #allocation4 [shape = 'f32[1,1]{1,0:T(1,128)S(1)}', space=vmem, size = 0x200, scoped, tag = 'scoped memory for tpu_custom_call.1']
  %s0 = inlined_call_operand.<no memory space> [shape: s32[1], index: 0, kind: input, shape index: {}]
  %s1 = inlined_call_operand.vmem [shape: f32[8,2], index: 1, kind: input, shape index: {}]
  %s2 = inlined_call_operand.vmem [shape: f32[2,96], index: 2, kind: input, shape index: {}]
  %s3 = inlined_call_operand.vmem [shape: f32[1,96], index: 3, kind: input, shape index: {}]
  %s4 = inlined_call_operand.vmem [shape: f32[32,96], index: 4, kind: input, shape index: {}]
  %s5 = inlined_call_operand.vmem [shape: f32[1,32], index: 5, kind: input, shape index: {}]
  %s6 = inlined_call_operand.vmem [shape: f32[32,1], index: 6, kind: input, shape index: {}]
  %s7 = inlined_call_operand.<no memory space> [shape: f32[1,1], index: 7, kind: input, shape index: {}]
  %s8 = inlined_call_operand.hbm [shape: f32[1,1], index: 8, kind: output, shape index: {}]
  %s9 = sld [smem:[#allocation0]]
  $region42: #{tpu_custom_call.1} parent=0
    _
  %s11 = ssub.s32 1, %s9
  %s12 = scalar_select 0, %s11, %s9
  %13 = sst [smem:[#allocation3]] %s0
  %v14 = vstv %s7
  %15 = vst [vmem:[#allocation4] sm:$0x1] %v14
  $region1: #{tpu_custom_call.1} parent=0
    #allocation5 [shape = 'u8[512]{0}', space=vmem, size = 0x400, scoped, tag = 'output window, operand 0, single buffered']
    #allocation6 [shape = 's32[1]{0}', space=sflag, size = 0x4, scoped, tag = 'scoped memory for tpu_custom_call.1']
    %16 = vsyncpa [#allocation6], 0
    // Predicated region
    $region2: #{tpu_custom_call.1} parent=1 // pred_check
      _
    $region3: #{tpu_custom_call.1} parent=1 // pred_check_branch
      %18 = sbr.rel (0) target = $region5
    $region4: #{tpu_custom_call.1} parent=1 // pred_region
      _
    $region5: #{tpu_custom_call.1} parent=1 // pred_fallthru
      _
    // Predicated region
    $region6: #{tpu_custom_call.1} parent=1 // pred_check
      _
    $region7: #{tpu_custom_call.1} parent=1 // pred_check_branch
      %20 = sbr.rel (0) target = $region9
    $region8: #{tpu_custom_call.1} parent=1 // pred_region
      _
    $region9: #{tpu_custom_call.1} parent=1 // pred_fallthru
      _
    // Predicated region
    $region10: #{tpu_custom_call.1} parent=1 // pred_check
      _
    $region11: #{tpu_custom_call.1} parent=1 // pred_check_branch
      %22 = sbr.rel (0) target = $region13
    $region12: #{tpu_custom_call.1} parent=1 // pred_region
      _
    $region13: #{tpu_custom_call.1} parent=1 // pred_fallthru
      _
    // Predicated region
    $region14: #{tpu_custom_call.1} parent=1 // pred_check
      _
    $region15: #{tpu_custom_call.1} parent=1 // pred_check_branch
      %24 = sbr.rel (0) target = $region17
    $region16: #{tpu_custom_call.1} parent=1 // pred_region
      _
    $region17: #{tpu_custom_call.1} parent=1 // pred_fallthru
      _
    // Predicated region
    $region18: #{tpu_custom_call.1} parent=1 // pred_check
      _
    $region19: #{tpu_custom_call.1} parent=1 // pred_check_branch
      %26 = sbr.rel (0) target = $region21
    $region20: #{tpu_custom_call.1} parent=1 // pred_region
      _
    $region21: #{tpu_custom_call.1} parent=1 // pred_fallthru
      _
    // Predicated region
    $region22: #{tpu_custom_call.1} parent=1 // pred_check
      _
    $region23: #{tpu_custom_call.1} parent=1 // pred_check_branch
      %28 = sbr.rel (0) target = $region25
    $region24: #{tpu_custom_call.1} parent=1 // pred_region
      _
    $region25: #{tpu_custom_call.1} parent=1 // pred_fallthru
      _
    // Predicated region
    $region26: #{tpu_custom_call.1} parent=1 // pred_check
      _
    $region27: #{tpu_custom_call.1} parent=1 // pred_check_branch
      %30 = sbr.rel (0) target = $region29
    $region28: #{tpu_custom_call.1} parent=1 // pred_region
      _
    $region29: #{tpu_custom_call.1} parent=1 // pred_fallthru
      _
    // Predicated region
    $region30: #{tpu_custom_call.1} parent=1 // pred_check
      _
    $region31: #{tpu_custom_call.1} parent=1 // pred_check_branch
      %32 = sbr.rel (0) target = $region33
    $region32: #{tpu_custom_call.1} parent=1 // pred_region
      _
    $region33: #{tpu_custom_call.1} parent=1 // pred_fallthru
      _
    %s33 = sld [smem:[#allocation3]]
    %v34 = vld [vmem:[%s1] sm:$0xff]
    %v35 = vld [vmem:[%s2] sm:$0x3]
    %v36 = vld [vmem:[%s3] sm:$0x1]
    %v38 = vperm.slane %v36, 0
    %vm40 = vcmask 15360
    %v42 = vsel %vm40, %v34, 0
    %vm44 = vcmask 1041408
    %v46 = vsel %vm44, %v35, 0
    %48 = vmatpush.msra.mxu0 0.0
    %49 = vmatpush.msra.mxu0 0.0
    %50 = vmatpush.msra.mxu0 0.0
    %51 = vmatpush.msra.mxu0 0.0
    %52 = vmatpush.msra.mxu0 0.0
    %53 = vmatpush.msra.mxu0 0.0
    %54 = vmatpush.msra.mxu0 0.0
    %55 = vmatpush.msra.mxu0 0.0
    %56 = vmatpush.msra.mxu0 0.0
    %57 = vmatpush.msra.mxu0 0.0
    %58 = vmatpush.msra.mxu0 0.0
    %59 = vmatpush.msra.mxu0 0.0
    %60 = vmatpush.msra.mxu0 0.0
    %61 = vmatpush.msra.mxu0 0.0
    %62 = vmatpush.msra.mxu0 0.0
    %63 = vmatpush.msra.mxu0 %v46
    %64 = vmatmul.f32.gmra.mxu0 %v42
    %v65 = vpop.f32.mrf.mxu0
    %v66 = vadd.f32 %v38, %v65
    %67 = vdwg.mxu0
    %vm68 = vcmask 785408
    %69 = vst.msk [vmem:[#allocation2] sm:$0xff] %vm68, %v66
    %v70 = vld [vmem:[%s4] sm:$0xff]
    %v71 = vld [vmem:[%s4 + $0x8] sm:$0xff]
    %v72 = vld [vmem:[%s4 + $0x10] sm:$0xff]
    %v73 = vld [vmem:[%s4 + $0x18] sm:$0xff]
    %v74 = vld [vmem:[%s5] sm:$0x1]
    %v75 = vld [vmem:[#allocation2] sm:$0x1]
    %vm76 = vcmask 261120
    %v78 = vsel %vm76, 0.0, 0
    %80 = vmatpush.msra.mxu0 0.0
    %81 = vmatpush.msra.mxu0 0.0
    %82 = vmatpush.msra.mxu0 0.0
    %83 = vmatpush.msra.mxu0 0.0
    %84 = vmatpush.msra.mxu0 0.0
    %85 = vmatpush.msra.mxu0 0.0
    %86 = vmatpush.msra.mxu0 0.0
    %87 = vmatpush.msra.mxu0 0.0
    %88 = vmatpush.msra.mxu0 0.0
    %89 = vmatpush.msra.mxu0 0.0
    %90 = vmatpush.msra.mxu0 0.0
    %91 = vmatpush.msra.mxu0 0.0
    %92 = vmatpush.msra.mxu0 %v73
    %93 = vmatpush.msra.mxu0 %v72
    %94 = vmatpush.msra.mxu0 %v71
    %95 = vmatpush.msra.mxu0 %v70
    %96 = vmatmul.f32.gmra.mxu0 %v78
    %v97 = vpop.f32.mrf.mxu0
    %v98 = vadd.f32 0.0, %v97
    %99 = vdwg.mxu0
    %v100 = vadd.f32 %v75, %v98
    %v101 = vxor.u32 %v100, 2147483648
    %v102 = vmul.f32 %v101, 1.442695
    %v103 = vpow.pop %v102
    %v104 = vadd.f32 %v103, 1.0
    %v105 = vrcp.pop %v104
    %v106 = vmul.f32 %v104, %v105
    %v107 = vsub.f32 1.0, %v106
    %v108 = vmul.f32 %v105, %v107
    %v109 = vadd.f32 %v105, %v108
    %vm110 = vweird.f32 %v104
    %vm111 = vweird.f32 %v105
    %vm112 = vmor %vm110, %vm111
    %v113 = vsel %vm112, %v105, %v109
    %v114 = vand.u32 2147483647, %v104
    %vm115 = vcmp.eq.f32.partialorder %v114, 8.507059e+37
    %v116 = vand.u32 %v104, 2147483648
    %v117 = vor.u32 1.1754944e-38, %v116
    %v118 = vsel %vm115, %v117, %v113
    %v119 = vmul.f32 1.0, %v118
    %v121 = vperm.slane %v74, 0
    %122 = vrot.lane.b32.xlu0 %v121, 64
    %v123 = vpop.permute.xlu0 %122
    %v125 = vadd.f32 %v98, %v123
    %127 = vrot.lane.b32.xlu0 %v125, 64
    %v128 = vpop.permute.xlu0 %127
    %v130 = vmul.f32 %v119, %v128
    %132 = vrot.lane.b32.xlu0 %v130, 64
    %v133 = vpop.permute.xlu0 %132
    %v135 = vadd.f32 %v75, %v133
    %v136 = vtanh.pop %v135
    %v137 = vsub.f32 1.0, %v119
    %139 = vrot.lane.b32.xlu0 %v136, 96
    %v140 = vpop.permute.xlu0 %139
    %v142 = vmul.f32 %v137, %v140
    %v143 = vmul.f32 %v119, 0.0
    %v144 = vadd.f32 %v142, %v143
    %p145 = scmp.gt.s32.totalorder %s33, 0
    %s146 = scalar_select %p145, 1, 0
    %v147 = vstv %s146
    %vm148 = vcmp.eq.s32.totalorder %v147, 1
    %v149 = vsel %vm148, %v144, 0.0
    %v150 = vld [vmem:[#allocation2 + $0x1] sm:$0x1]
    %152 = vrot.lane.b32.xlu0 %v149, 96
    %v153 = vpop.permute.xlu0 %152
    %v154 = vsel %vm76, %v153, 0
    %156 = vmatpush.msra.mxu0 0.0
    %157 = vmatpush.msra.mxu0 0.0
    %158 = vmatpush.msra.mxu0 0.0
    %159 = vmatpush.msra.mxu0 0.0
    %160 = vmatpush.msra.mxu0 0.0
    %161 = vmatpush.msra.mxu0 0.0
    %162 = vmatpush.msra.mxu0 0.0
    %163 = vmatpush.msra.mxu0 0.0
    %164 = vmatpush.msra.mxu0 0.0
    %165 = vmatpush.msra.mxu0 0.0
    %166 = vmatpush.msra.mxu0 0.0
    %167 = vmatpush.msra.mxu0 0.0
    %168 = vmatpush.msra.mxu0 %v73
    %169 = vmatpush.msra.mxu0 %v72
    %170 = vmatpush.msra.mxu0 %v71
    %171 = vmatpush.msra.mxu0 %v70
    %172 = vmatmul.f32.gmra.mxu0 %v154
    %v173 = vpop.f32.mrf.mxu0
    %v174 = vadd.f32 0.0, %v173
    %175 = vdwg.mxu0
    %v176 = vadd.f32 %v150, %v174
    %v177 = vxor.u32 %v176, 2147483648
    %v178 = vmul.f32 %v177, 1.442695
    %v179 = vpow.pop %v178
    %v180 = vadd.f32 %v179, 1.0
    %v181 = vrcp.pop %v180
    %v182 = vmul.f32 %v180, %v181
    %v183 = vsub.f32 1.0, %v182
    %v184 = vmul.f32 %v181, %v183
    %v185 = vadd.f32 %v181, %v184
    %vm186 = vweird.f32 %v180
    %vm187 = vweird.f32 %v181
    %vm188 = vmor %vm186, %vm187
    %v189 = vsel %vm188, %v181, %v185
    %v190 = vand.u32 2147483647, %v180
    %vm191 = vcmp.eq.f32.partialorder %v190, 8.507059e+37
    %v192 = vand.u32 %v180, 2147483648
    %v193 = vor.u32 1.1754944e-38, %v192
    %v194 = vsel %vm191, %v193, %v189
    %v195 = vmul.f32 1.0, %v194
    %v196 = vadd.f32 %v174, %v123
    %198 = vrot.lane.b32.xlu0 %v196, 64
    %v199 = vpop.permute.xlu0 %198
    %v201 = vmul.f32 %v195, %v199
    %203 = vrot.lane.b32.xlu0 %v201, 64
    %v204 = vpop.permute.xlu0 %203
    %v206 = vadd.f32 %v150, %v204
    %v207 = vtanh.pop %v206
    %v208 = vsub.f32 1.0, %v195
    %210 = vrot.lane.b32.xlu0 %v207, 96
    %v211 = vpop.permute.xlu0 %210
    %v213 = vmul.f32 %v208, %v211
    %v214 = vmul.f32 %v195, %v149
    %v215 = vadd.f32 %v213, %v214
    %p216 = scmp.gt.s32.totalorder %s33, 1
    %s217 = scalar_select %p216, 1, 0
    %v218 = vstv %s217
    %vm219 = vcmp.eq.s32.totalorder %v218, 1
    %v220 = vsel %vm219, %v215, %v149
    %v221 = vld [vmem:[#allocation2 + $0x2] sm:$0x1]
    %223 = vrot.lane.b32.xlu0 %v220, 96
    %v224 = vpop.permute.xlu0 %223
    %v225 = vsel %vm76, %v224, 0
    %227 = vmatpush.msra.mxu0 0.0
    %228 = vmatpush.msra.mxu0 0.0
    %229 = vmatpush.msra.mxu0 0.0
    %230 = vmatpush.msra.mxu0 0.0
    %231 = vmatpush.msra.mxu0 0.0
    %232 = vmatpush.msra.mxu0 0.0
    %233 = vmatpush.msra.mxu0 0.0
    %234 = vmatpush.msra.mxu0 0.0
    %235 = vmatpush.msra.mxu0 0.0
    %236 = vmatpush.msra.mxu0 0.0
    %237 = vmatpush.msra.mxu0 0.0
    %238 = vmatpush.msra.mxu0 0.0
    %239 = vmatpush.msra.mxu0 %v73
    %240 = vmatpush.msra.mxu0 %v72
    %241 = vmatpush.msra.mxu0 %v71
    %242 = vmatpush.msra.mxu0 %v70
    %243 = vmatmul.f32.gmra.mxu0 %v225
    %v244 = vpop.f32.mrf.mxu0
    %v245 = vadd.f32 0.0, %v244
    %246 = vdwg.mxu0
    %v247 = vadd.f32 %v221, %v245
    %v248 = vxor.u32 %v247, 2147483648
    %v249 = vmul.f32 %v248, 1.442695
    %v250 = vpow.pop %v249
    %v251 = vadd.f32 %v250, 1.0
    %v252 = vrcp.pop %v251
    %v253 = vmul.f32 %v251, %v252
    %v254 = vsub.f32 1.0, %v253
    %v255 = vmul.f32 %v252, %v254
    %v256 = vadd.f32 %v252, %v255
    %vm257 = vweird.f32 %v251
    %vm258 = vweird.f32 %v252
    %vm259 = vmor %vm257, %vm258
    %v260 = vsel %vm259, %v252, %v256
    %v261 = vand.u32 2147483647, %v251
    %vm262 = vcmp.eq.f32.partialorder %v261, 8.507059e+37
    %v263 = vand.u32 %v251, 2147483648
    %v264 = vor.u32 1.1754944e-38, %v263
    %v265 = vsel %vm262, %v264, %v260
    %v266 = vmul.f32 1.0, %v265
    %v267 = vadd.f32 %v245, %v123
    %269 = vrot.lane.b32.xlu0 %v267, 64
    %v270 = vpop.permute.xlu0 %269
    %v272 = vmul.f32 %v266, %v270
    %274 = vrot.lane.b32.xlu0 %v272, 64
    %v275 = vpop.permute.xlu0 %274
    %v277 = vadd.f32 %v221, %v275
    %v278 = vtanh.pop %v277
    %v279 = vsub.f32 1.0, %v266
    %281 = vrot.lane.b32.xlu0 %v278, 96
    %v282 = vpop.permute.xlu0 %281
    %v284 = vmul.f32 %v279, %v282
    %v285 = vmul.f32 %v266, %v220
    %v286 = vadd.f32 %v284, %v285
    %p287 = scmp.gt.s32.totalorder %s33, 2
    %s288 = scalar_select %p287, 1, 0
    %v289 = vstv %s288
    %vm290 = vcmp.eq.s32.totalorder %v289, 1
    %v291 = vsel %vm290, %v286, %v220
    %v292 = vld [vmem:[#allocation2 + $0x3] sm:$0x1]
    %294 = vrot.lane.b32.xlu0 %v291, 96
    %v295 = vpop.permute.xlu0 %294
    %v296 = vsel %vm76, %v295, 0
    %298 = vmatpush.msra.mxu0 0.0
    %299 = vmatpush.msra.mxu0 0.0
    %300 = vmatpush.msra.mxu0 0.0
    %301 = vmatpush.msra.mxu0 0.0
    %302 = vmatpush.msra.mxu0 0.0
    %303 = vmatpush.msra.mxu0 0.0
    %304 = vmatpush.msra.mxu0 0.0
    %305 = vmatpush.msra.mxu0 0.0
    %306 = vmatpush.msra.mxu0 0.0
    %307 = vmatpush.msra.mxu0 0.0
    %308 = vmatpush.msra.mxu0 0.0
    %309 = vmatpush.msra.mxu0 0.0
    %310 = vmatpush.msra.mxu0 %v73
    %311 = vmatpush.msra.mxu0 %v72
    %312 = vmatpush.msra.mxu0 %v71
    %313 = vmatpush.msra.mxu0 %v70
    %314 = vmatmul.f32.gmra.mxu0 %v296
    %v315 = vpop.f32.mrf.mxu0
    %v316 = vadd.f32 0.0, %v315
    %317 = vdwg.mxu0
    %v318 = vadd.f32 %v292, %v316
    %v319 = vxor.u32 %v318, 2147483648
    %v320 = vmul.f32 %v319, 1.442695
    %v321 = vpow.pop %v320
    %v322 = vadd.f32 %v321, 1.0
    %v323 = vrcp.pop %v322
    %v324 = vmul.f32 %v322, %v323
    %v325 = vsub.f32 1.0, %v324
    %v326 = vmul.f32 %v323, %v325
    %v327 = vadd.f32 %v323, %v326
    %vm328 = vweird.f32 %v322
    %vm329 = vweird.f32 %v323
    %vm330 = vmor %vm328, %vm329
    %v331 = vsel %vm330, %v323, %v327
    %v332 = vand.u32 2147483647, %v322
    %vm333 = vcmp.eq.f32.partialorder %v332, 8.507059e+37
    %v334 = vand.u32 %v322, 2147483648
    %v335 = vor.u32 1.1754944e-38, %v334
    %v336 = vsel %vm333, %v335, %v331
    %v337 = vmul.f32 1.0, %v336
    %v338 = vadd.f32 %v316, %v123
    %340 = vrot.lane.b32.xlu0 %v338, 64
    %v341 = vpop.permute.xlu0 %340
    %v343 = vmul.f32 %v337, %v341
    %345 = vrot.lane.b32.xlu0 %v343, 64
    %v346 = vpop.permute.xlu0 %345
    %v348 = vadd.f32 %v292, %v346
    %v349 = vtanh.pop %v348
    %v350 = vsub.f32 1.0, %v337
    %352 = vrot.lane.b32.xlu0 %v349, 96
    %v353 = vpop.permute.xlu0 %352
    %v355 = vmul.f32 %v350, %v353
    %v356 = vmul.f32 %v337, %v291
    %v357 = vadd.f32 %v355, %v356
    %p358 = scmp.gt.s32.totalorder %s33, 3
    %s359 = scalar_select %p358, 1, 0
    %v360 = vstv %s359
    %vm361 = vcmp.eq.s32.totalorder %v360, 1
    %v362 = vsel %vm361, %v357, %v291
    %v363 = vld [vmem:[#allocation2 + $0x4] sm:$0x1]
    %365 = vrot.lane.b32.xlu0 %v362, 96
    %v366 = vpop.permute.xlu0 %365
    %v367 = vsel %vm76, %v366, 0
    %369 = vmatpush.msra.mxu0 0.0
    %370 = vmatpush.msra.mxu0 0.0
    %371 = vmatpush.msra.mxu0 0.0
    %372 = vmatpush.msra.mxu0 0.0
    %373 = vmatpush.msra.mxu0 0.0
    %374 = vmatpush.msra.mxu0 0.0
    %375 = vmatpush.msra.mxu0 0.0
    %376 = vmatpush.msra.mxu0 0.0
    %377 = vmatpush.msra.mxu0 0.0
    %378 = vmatpush.msra.mxu0 0.0
    %379 = vmatpush.msra.mxu0 0.0
    %380 = vmatpush.msra.mxu0 0.0
    %381 = vmatpush.msra.mxu0 %v73
    %382 = vmatpush.msra.mxu0 %v72
    %383 = vmatpush.msra.mxu0 %v71
    %384 = vmatpush.msra.mxu0 %v70
    %385 = vmatmul.f32.gmra.mxu0 %v367
    %v386 = vpop.f32.mrf.mxu0
    %v387 = vadd.f32 0.0, %v386
    %388 = vdwg.mxu0
    %v389 = vadd.f32 %v363, %v387
    %v390 = vxor.u32 %v389, 2147483648
    %v391 = vmul.f32 %v390, 1.442695
    %v392 = vpow.pop %v391
    %v393 = vadd.f32 %v392, 1.0
    %v394 = vrcp.pop %v393
    %v395 = vmul.f32 %v393, %v394
    %v396 = vsub.f32 1.0, %v395
    %v397 = vmul.f32 %v394, %v396
    %v398 = vadd.f32 %v394, %v397
    %vm399 = vweird.f32 %v393
    %vm400 = vweird.f32 %v394
    %vm401 = vmor %vm399, %vm400
    %v402 = vsel %vm401, %v394, %v398
    %v403 = vand.u32 2147483647, %v393
    %vm404 = vcmp.eq.f32.partialorder %v403, 8.507059e+37
    %v405 = vand.u32 %v393, 2147483648
    %v406 = vor.u32 1.1754944e-38, %v405
    %v407 = vsel %vm404, %v406, %v402
    %v408 = vmul.f32 1.0, %v407
    %v409 = vadd.f32 %v387, %v123
    %411 = vrot.lane.b32.xlu0 %v409, 64
    %v412 = vpop.permute.xlu0 %411
    %v414 = vmul.f32 %v408, %v412
    %416 = vrot.lane.b32.xlu0 %v414, 64
    %v417 = vpop.permute.xlu0 %416
    %v419 = vadd.f32 %v363, %v417
    %v420 = vtanh.pop %v419
    %v421 = vsub.f32 1.0, %v408
    %423 = vrot.lane.b32.xlu0 %v420, 96
    %v424 = vpop.permute.xlu0 %423
    %v426 = vmul.f32 %v421, %v424
    %v427 = vmul.f32 %v408, %v362
    %v428 = vadd.f32 %v426, %v427
    %p429 = scmp.gt.s32.totalorder %s33, 4
    %s430 = scalar_select %p429, 1, 0
    %v431 = vstv %s430
    %vm432 = vcmp.eq.s32.totalorder %v431, 1
    %v433 = vsel %vm432, %v428, %v362
    %v434 = vld [vmem:[#allocation2 + $0x5] sm:$0x1]
    %436 = vrot.lane.b32.xlu0 %v433, 96
    %v437 = vpop.permute.xlu0 %436
    %v438 = vsel %vm76, %v437, 0
    %440 = vmatpush.msra.mxu0 0.0
    %441 = vmatpush.msra.mxu0 0.0
    %442 = vmatpush.msra.mxu0 0.0
    %443 = vmatpush.msra.mxu0 0.0
    %444 = vmatpush.msra.mxu0 0.0
    %445 = vmatpush.msra.mxu0 0.0
    %446 = vmatpush.msra.mxu0 0.0
    %447 = vmatpush.msra.mxu0 0.0
    %448 = vmatpush.msra.mxu0 0.0
    %449 = vmatpush.msra.mxu0 0.0
    %450 = vmatpush.msra.mxu0 0.0
    %451 = vmatpush.msra.mxu0 0.0
    %452 = vmatpush.msra.mxu0 %v73
    %453 = vmatpush.msra.mxu0 %v72
    %454 = vmatpush.msra.mxu0 %v71
    %455 = vmatpush.msra.mxu0 %v70
    %456 = vmatmul.f32.gmra.mxu0 %v438
    %v457 = vpop.f32.mrf.mxu0
    %v458 = vadd.f32 0.0, %v457
    %459 = vdwg.mxu0
    %v460 = vadd.f32 %v434, %v458
    %v461 = vxor.u32 %v460, 2147483648
    %v462 = vmul.f32 %v461, 1.442695
    %v463 = vpow.pop %v462
    %v464 = vadd.f32 %v463, 1.0
    %v465 = vrcp.pop %v464
    %v466 = vmul.f32 %v464, %v465
    %v467 = vsub.f32 1.0, %v466
    %v468 = vmul.f32 %v465, %v467
    %v469 = vadd.f32 %v465, %v468
    %vm470 = vweird.f32 %v464
    %vm471 = vweird.f32 %v465
    %vm472 = vmor %vm470, %vm471
    %v473 = vsel %vm472, %v465, %v469
    %v474 = vand.u32 2147483647, %v464
    %vm475 = vcmp.eq.f32.partialorder %v474, 8.507059e+37
    %v476 = vand.u32 %v464, 2147483648
    %v477 = vor.u32 1.1754944e-38, %v476
    %v478 = vsel %vm475, %v477, %v473
    %v479 = vmul.f32 1.0, %v478
    %v480 = vadd.f32 %v458, %v123
    %482 = vrot.lane.b32.xlu0 %v480, 64
    %v483 = vpop.permute.xlu0 %482
    %v485 = vmul.f32 %v479, %v483
    %487 = vrot.lane.b32.xlu0 %v485, 64
    %v488 = vpop.permute.xlu0 %487
    %v490 = vadd.f32 %v434, %v488
    %v491 = vtanh.pop %v490
    %v492 = vsub.f32 1.0, %v479
    %494 = vrot.lane.b32.xlu0 %v491, 96
    %v495 = vpop.permute.xlu0 %494
    %v497 = vmul.f32 %v492, %v495
    %v498 = vmul.f32 %v479, %v433
    %v499 = vadd.f32 %v497, %v498
    %p500 = scmp.gt.s32.totalorder %s33, 5
    %s501 = scalar_select %p500, 1, 0
    %v502 = vstv %s501
    %vm503 = vcmp.eq.s32.totalorder %v502, 1
    %v504 = vsel %vm503, %v499, %v433
    %v505 = vld [vmem:[#allocation2 + $0x6] sm:$0x1]
    %507 = vrot.lane.b32.xlu0 %v504, 96
    %v508 = vpop.permute.xlu0 %507
    %v509 = vsel %vm76, %v508, 0
    %511 = vmatpush.msra.mxu0 0.0
    %512 = vmatpush.msra.mxu0 0.0
    %513 = vmatpush.msra.mxu0 0.0
    %514 = vmatpush.msra.mxu0 0.0
    %515 = vmatpush.msra.mxu0 0.0
    %516 = vmatpush.msra.mxu0 0.0
    %517 = vmatpush.msra.mxu0 0.0
    %518 = vmatpush.msra.mxu0 0.0
    %519 = vmatpush.msra.mxu0 0.0
    %520 = vmatpush.msra.mxu0 0.0
    %521 = vmatpush.msra.mxu0 0.0
    %522 = vmatpush.msra.mxu0 0.0
    %523 = vmatpush.msra.mxu0 %v73
    %524 = vmatpush.msra.mxu0 %v72
    %525 = vmatpush.msra.mxu0 %v71
    %526 = vmatpush.msra.mxu0 %v70
    %527 = vmatmul.f32.gmra.mxu0 %v509
    %v528 = vpop.f32.mrf.mxu0
    %v529 = vadd.f32 0.0, %v528
    %530 = vdwg.mxu0
    %v531 = vadd.f32 %v505, %v529
    %v532 = vxor.u32 %v531, 2147483648
    %v533 = vmul.f32 %v532, 1.442695
    %v534 = vpow.pop %v533
    %v535 = vadd.f32 %v534, 1.0
    %v536 = vrcp.pop %v535
    %v537 = vmul.f32 %v535, %v536
    %v538 = vsub.f32 1.0, %v537
    %v539 = vmul.f32 %v536, %v538
    %v540 = vadd.f32 %v536, %v539
    %vm541 = vweird.f32 %v535
    %vm542 = vweird.f32 %v536
    %vm543 = vmor %vm541, %vm542
    %v544 = vsel %vm543, %v536, %v540
    %v545 = vand.u32 2147483647, %v535
    %vm546 = vcmp.eq.f32.partialorder %v545, 8.507059e+37
    %v547 = vand.u32 %v535, 2147483648
    %v548 = vor.u32 1.1754944e-38, %v547
    %v549 = vsel %vm546, %v548, %v544
    %v550 = vmul.f32 1.0, %v549
    %v551 = vadd.f32 %v529, %v123
    %553 = vrot.lane.b32.xlu0 %v551, 64
    %v554 = vpop.permute.xlu0 %553
    %v556 = vmul.f32 %v550, %v554
    %558 = vrot.lane.b32.xlu0 %v556, 64
    %v559 = vpop.permute.xlu0 %558
    %v561 = vadd.f32 %v505, %v559
    %v562 = vtanh.pop %v561
    %v563 = vsub.f32 1.0, %v550
    %565 = vrot.lane.b32.xlu0 %v562, 96
    %v566 = vpop.permute.xlu0 %565
    %v568 = vmul.f32 %v563, %v566
    %v569 = vmul.f32 %v550, %v504
    %v570 = vadd.f32 %v568, %v569
    %p571 = scmp.gt.s32.totalorder %s33, 6
    %s572 = scalar_select %p571, 1, 0
    %v573 = vstv %s572
    %vm574 = vcmp.eq.s32.totalorder %v573, 1
    %v575 = vsel %vm574, %v570, %v504
    %v576 = vld [vmem:[#allocation2 + $0x7] sm:$0x1]
    %578 = vrot.lane.b32.xlu0 %v575, 96
    %v579 = vpop.permute.xlu0 %578
    %v580 = vsel %vm76, %v579, 0
    %582 = vmatpush.msra.mxu0 0.0
    %583 = vmatpush.msra.mxu0 0.0
    %584 = vmatpush.msra.mxu0 0.0
    %585 = vmatpush.msra.mxu0 0.0
    %586 = vmatpush.msra.mxu0 0.0
    %587 = vmatpush.msra.mxu0 0.0
    %588 = vmatpush.msra.mxu0 0.0
    %589 = vmatpush.msra.mxu0 0.0
    %590 = vmatpush.msra.mxu0 0.0
    %591 = vmatpush.msra.mxu0 0.0
    %592 = vmatpush.msra.mxu0 0.0
    %593 = vmatpush.msra.mxu0 0.0
    %594 = vmatpush.msra.mxu0 %v73
    %595 = vmatpush.msra.mxu0 %v72
    %596 = vmatpush.msra.mxu0 %v71
    %597 = vmatpush.msra.mxu0 %v70
    %598 = vmatmul.f32.gmra.mxu0 %v580
    %v599 = vpop.f32.mrf.mxu0
    %v600 = vadd.f32 0.0, %v599
    %601 = vdwg.mxu0
    %v602 = vadd.f32 %v576, %v600
    %v603 = vxor.u32 %v602, 2147483648
    %v604 = vmul.f32 %v603, 1.442695
    %v605 = vpow.pop %v604
    %v606 = vadd.f32 %v605, 1.0
    %v607 = vrcp.pop %v606
    %v608 = vmul.f32 %v606, %v607
    %v609 = vsub.f32 1.0, %v608
    %v610 = vmul.f32 %v607, %v609
    %v611 = vadd.f32 %v607, %v610
    %vm612 = vweird.f32 %v606
    %vm613 = vweird.f32 %v607
    %vm614 = vmor %vm612, %vm613
    %v615 = vsel %vm614, %v607, %v611
    %v616 = vand.u32 2147483647, %v606
    %vm617 = vcmp.eq.f32.partialorder %v616, 8.507059e+37
    %v618 = vand.u32 %v606, 2147483648
    %v619 = vor.u32 1.1754944e-38, %v618
    %v620 = vsel %vm617, %v619, %v615
    %v621 = vmul.f32 1.0, %v620
    %v622 = vadd.f32 %v600, %v123
    %624 = vrot.lane.b32.xlu0 %v622, 64
    %v625 = vpop.permute.xlu0 %624
    %v627 = vmul.f32 %v621, %v625
    %629 = vrot.lane.b32.xlu0 %v627, 64
    %v630 = vpop.permute.xlu0 %629
    %v632 = vadd.f32 %v576, %v630
    %v633 = vtanh.pop %v632
    %v634 = vsub.f32 1.0, %v621
    %636 = vrot.lane.b32.xlu0 %v633, 96
    %v637 = vpop.permute.xlu0 %636
    %v639 = vmul.f32 %v634, %v637
    %v640 = vmul.f32 %v621, %v575
    %v641 = vadd.f32 %v639, %v640
    %p642 = scmp.gt.s32.totalorder %s33, 7
    %s643 = scalar_select %p642, 1, 0
    %v644 = vstv %s643
    %vm645 = vcmp.eq.s32.totalorder %v644, 1
    %v646 = vsel %vm645, %v641, %v575
    %v647 = vld [vmem:[%s6] sm:$0xff]
    %v648 = vld [vmem:[%s6 + $0x8] sm:$0xff]
    %v649 = vld [vmem:[%s6 + $0x10] sm:$0xff]
    %v650 = vld [vmem:[%s6 + $0x18] sm:$0xff]
    %v651 = vld [vmem:[#allocation4] sm:$0x1]
    %653 = vrot.lane.b32.xlu0 %v646, 96
    %v654 = vpop.permute.xlu0 %653
    %v655 = vsel %vm76, %v654, 0
    %657 = vmatpush.msra.mxu0 0.0
    %658 = vmatpush.msra.mxu0 0.0
    %659 = vmatpush.msra.mxu0 0.0
    %660 = vmatpush.msra.mxu0 0.0
    %661 = vmatpush.msra.mxu0 0.0
    %662 = vmatpush.msra.mxu0 0.0
    %663 = vmatpush.msra.mxu0 0.0
    %664 = vmatpush.msra.mxu0 0.0
    %665 = vmatpush.msra.mxu0 0.0
    %666 = vmatpush.msra.mxu0 0.0
    %667 = vmatpush.msra.mxu0 0.0
    %668 = vmatpush.msra.mxu0 0.0
    %669 = vmatpush.msra.mxu0 %v650
    %670 = vmatpush.msra.mxu0 %v649
    %671 = vmatpush.msra.mxu0 %v648
    %672 = vmatpush.msra.mxu0 %v647
    %673 = vmatmul.f32.gmra.mxu0 %v655
    %v674 = vpop.f32.mrf.mxu0
    %v675 = vadd.f32 %v651, %v674
    %676 = vdwg.mxu0
    %v677 = vxor.u32 %v675, 2147483648
    %v678 = vmul.f32 %v677, 1.442695
    %v679 = vpow.pop %v678
    %v680 = vadd.f32 %v679, 1.0
    %v681 = vrcp.pop %v680
    %v682 = vmul.f32 %v680, %v681
    %v683 = vsub.f32 1.0, %v682
    %v684 = vmul.f32 %v681, %v683
    %v685 = vadd.f32 %v681, %v684
    %vm686 = vweird.f32 %v680
    %vm687 = vweird.f32 %v681
    %vm688 = vmor %vm686, %vm687
    %v689 = vsel %vm688, %v681, %v685
    %v690 = vand.u32 2147483647, %v680
    %vm691 = vcmp.eq.f32.partialorder %v690, 8.507059e+37
    %v692 = vand.u32 %v680, 2147483648
    %v693 = vor.u32 1.1754944e-38, %v692
    %v694 = vsel %vm691, %v693, %v689
    %v695 = vmul.f32 1.0, %v694
    %vm696 = vcmask 0
    %697 = vst.msk [vmem:[#allocation5] sm:$0x1] %vm696, %v695
    // Predicated region
    $region34: #{tpu_custom_call.1} parent=1 // pred_check
      _
    $region35: #{tpu_custom_call.1} parent=1 // pred_check_branch
      %699 = sbr.rel (0) target = $region37
    $region36: #{tpu_custom_call.1} parent=1 // pred_region
      %701 = vsyncadd [#allocation6], 0
      %s703 = sshll.u32 [#allocation5], 4
      %s704 = int_to_ptr.vmem [resolvable:$true] %s703
      %s705 = sshll.u32 %s8, 4
      %s706 = int_to_ptr.hbm [resolvable:$true] %s705
      %708 = dma.vmem_to_hbm [thread:$0]  %s704, 16, %s706, [#allocation6]
    $region37: #{tpu_custom_call.1} parent=1 // pred_fallthru
      _
    // Predicated region
    $region38: #{tpu_custom_call.1} parent=1 // pred_check
      _
    $region39: #{tpu_custom_call.1} parent=1 // pred_check_branch
      %710 = sbr.rel (0) target = $region41
    $region40: #{tpu_custom_call.1} parent=1 // pred_region
      %712 = dma.done [#allocation6], 16
    $region41: #{tpu_custom_call.1} parent=1 // pred_fallthru
      _
    %713 = vsyncpa [#allocation6], 1

</llo_original>
